<compile_context>
chip_gen: v7x
topology: tpu7x:2x2x1
jax: 0.10.0
libtpu: 0.0.40
codegen_flags: <defaults>
</compile_context>

<pallas_src>
import functools

import jax
import jax.numpy as jnp
from jax import lax
from jax.experimental import pallas as pl
from jax.experimental.pallas import tpu as pltpu


def _cdiv(a, b):
    return -(-a // b)


def _vmem_capacity_bytes(default=64 * 1024 * 1024):
    """Physical VMEM per core; conservative (v7x) fallback if the query fails."""
    try:
        cap = getattr(pltpu.get_tpu_info(), "vmem_capacity_bytes", None)
        if cap:
            return int(cap)
    except Exception:
        pass
    return default


def _f1_partials_kernel(y_pred_ref, y_true_ref, out_ref, *,
                        logits, chunk_rows, n_chunks, tile_rows,
                        steps_per_core, n_valid_rows, needs_mask):
    """Streaming reduction: accumulate per-class (tp, sum(yp), sum(yt)).

    out_ref block: (1, 3, chunk_rows, c_eff) f32, resident across the
    reduction ("arbitrary") axis; one block per leading "parallel" core.
    """
    i = pl.program_id(1)
    c_eff = y_pred_ref.shape[1]

    @pl.when(i == 0)
    def _init():
        out_ref[...] = jnp.zeros_like(out_ref)

    if needs_mask:
        tile_start = (pl.program_id(0) * steps_per_core + i) * tile_rows

    def chunk_body(c, carry):
        tp, sp, st = carry
        if isinstance(c, int):
            r0 = c * chunk_rows
        else:
            r0 = pl.multiple_of(c * chunk_rows, chunk_rows)
        yp = y_pred_ref[pl.ds(r0, chunk_rows), :].astype(jnp.float32)
        yt = y_true_ref[pl.ds(r0, chunk_rows), :].astype(jnp.float32)
        if logits:
            # sigmoid(x) == 0.5 * (tanh(x / 2) + 1): a single EUP push/element.
            yp = 0.5 * (jnp.tanh(0.5 * yp) + 1.0)
        if needs_mask:
            row = (tile_start + r0
                   + lax.broadcasted_iota(jnp.int32, (chunk_rows, 1), 0))
            valid = row < n_valid_rows
            yp = jnp.where(valid, yp, 0.0)
            yt = jnp.where(valid, yt, 0.0)
        return (tp + yt * yp, sp + yp, st + yt)

    zero = jnp.zeros((chunk_rows, c_eff), jnp.float32)
    if n_chunks == 1:
        tp_c, sp_c, st_c = chunk_body(0, (zero, zero, zero))
    else:
        tp_c, sp_c, st_c = lax.fori_loop(
            0, n_chunks, chunk_body, (zero, zero, zero),
            unroll=min(4, n_chunks))

    out_ref[0, 0, :, :] += tp_c
    out_ref[0, 1, :, :] += sp_c
    out_ref[0, 2, :, :] += st_c


def f1_loss(y_pred, y_true, *, epsilon=1e-07, logits=True, spec_weight=1.0,
            max_tile_rows=None):
    """Pallas-TPU forward of the PyTorch F1Loss module. Returns a 0-d f32."""
    assert y_pred.ndim == 2 and y_true.ndim == 2
    N, C = y_pred.shape
    assert y_true.shape == (N, C)
    assert N > 0 and C > 0

    # Lane folding: pack `fold` batch rows into lanes so the last dim is a
    # full 128-lane multiple when C is narrow (free row-major reshape).
    fold = 1
    if 0 < C < 128 and 128 % C == 0 and N % (128 // C) == 0:
        fold = 128 // C
    n_eff = N // fold
    c_eff = C * fold
    yp2 = y_pred.reshape(n_eff, c_eff) if fold > 1 else y_pred
    yt2 = y_true.reshape(n_eff, c_eff) if fold > 1 else y_true

    # Chunk rows: multiple of the sublane packing of the narrowest input dtype,
    # sized so the chunk working set (~6 live copies) stays inside the vregs.
    min_item = min(y_pred.dtype.itemsize, y_true.dtype.itemsize)
    gran = max(8, 32 // max(min_item, 1))            # 8 f32 / 16 bf16 / 32 int8
    chunk_rows = (4096 // max(c_eff, 1)) // gran * gran
    chunk_rows = max(gran, min(32, chunk_rows))

    bytes_per_row = c_eff * (y_pred.dtype.itemsize + y_true.dtype.itemsize)
    if n_eff <= chunk_rows:
        # Tiny batch: one full-array block (block dims == array dims).
        chunk_rows = n_eff
        tile_rows = n_eff
    else:
        # Tile rows from a generation-aware budget for the two double-buffered
        # input slabs (~35% of physical VMEM).
        budget = int(_vmem_capacity_bytes() * 0.35)
        tile_rows = budget // (2 * bytes_per_row)
        if max_tile_rows is not None:
            tile_rows = min(tile_rows, int(max_tile_rows))
        # Keep at least two tiles so the leading "parallel" axis can feed both
        # v7x TensorCores (just one extra sequential step on 1-core chips).
        half = _cdiv(_cdiv(n_eff, 2), chunk_rows) * chunk_rows
        tile_rows = min(tile_rows, half)
        tile_rows = max(chunk_rows, tile_rows // chunk_rows * chunk_rows)

    n_chunks = max(1, tile_rows // chunk_rows)
    num_tiles = _cdiv(n_eff, tile_rows)
    n_par = 2 if num_tiles >= 2 else 1
    steps_per_core = _cdiv(num_tiles, n_par)
    clamp = n_par * steps_per_core > num_tiles          # dummy trailing tile(s)
    needs_mask = clamp or (n_eff % tile_rows != 0)

    if clamp:
        def in_map(p, i):
            return (jnp.minimum(p * steps_per_core + i, num_tiles - 1), 0)
    else:
        def in_map(p, i):
            return (p * steps_per_core + i, 0)

    in_slab = 2 * tile_rows * bytes_per_row             # double-buffered inputs
    vmem_limit = min(max(in_slab + 4 * 1024 * 1024, 32 * 1024 * 1024),
                     int(_vmem_capacity_bytes() * 0.9))

    kernel = functools.partial(
        _f1_partials_kernel,
        logits=bool(logits), chunk_rows=int(chunk_rows), n_chunks=int(n_chunks),
        tile_rows=int(tile_rows), steps_per_core=int(steps_per_core),
        n_valid_rows=int(n_eff), needs_mask=bool(needs_mask))

    partials = pl.pallas_call(
        kernel,
        out_shape=jax.ShapeDtypeStruct((n_par, 3, chunk_rows, c_eff),
                                       jnp.float32),
        grid_spec=pltpu.PrefetchScalarGridSpec(
            num_scalar_prefetch=0,
            grid=(n_par, steps_per_core),
            in_specs=[pl.BlockSpec((tile_rows, c_eff), in_map),
                      pl.BlockSpec((tile_rows, c_eff), in_map)],
            out_specs=pl.BlockSpec((1, 3, chunk_rows, c_eff),
                                   lambda p, i: (p, 0, 0, 0)),
        ),
        compiler_params=pltpu.CompilerParams(
            dimension_semantics=("parallel", "arbitrary"),
            vmem_limit_bytes=int(vmem_limit)),
    )(yp2, yt2)

    # Tiny O(C) epilogue in plain JAX (kernel stays a pure streaming reduction).
    sums = partials.sum(axis=(0, 2))                     # (3, c_eff)
    tp, sp, st = sums[0], sums[1], sums[2]
    if fold > 1:
        tp = tp.reshape(fold, C).sum(axis=0)
        sp = sp.reshape(fold, C).sum(axis=0)
        st = st.reshape(fold, C).sum(axis=0)
    fp = sp - tp
    fn = st - tp
    tn = jnp.float32(N) - sp - st + tp
    precision = tp / (tp + fp + epsilon)
    recall = tp / (tp + fn + epsilon)
    f1 = 2.0 * precision * recall / (precision + recall + epsilon)
    f1 = jnp.clip(f1, epsilon, 1.0 - epsilon)
    spec = tn / (tn + fp + epsilon)
    return (1.0 - f1.mean()) + spec_weight * (1.0 - spec.mean())


def f1_loss_ref(y_pred, y_true, *, epsilon=1e-07, logits=True, spec_weight=1.0):
    """Plain-JAX reference mirroring the PyTorch forward."""
    y_pred = y_pred.astype(jnp.float32)
    y_true = y_true.astype(jnp.float32)
    if logits:
        y_pred = jax.nn.sigmoid(y_pred)
    tp = (y_true * y_pred).sum(axis=0)
    tn = ((1 - y_true) * (1 - y_pred)).sum(axis=0)
    fp = ((1 - y_true) * y_pred).sum(axis=0)
    fn = (y_true * (1 - y_pred)).sum(axis=0)
    precision = tp / (tp + fp + epsilon)
    recall = tp / (tp + fn + epsilon)
    f1 = 2 * precision * recall / (precision + recall + epsilon)
    f1 = jnp.clip(f1, epsilon, 1 - epsilon)
    spec = tn / (tn + fp + epsilon)
    return 1 - f1.mean() + spec_weight * (1 - spec.mean())


if __name__ == "__main__":
    key = jax.random.PRNGKey(0)
    keys = jax.random.split(key, 8)

    # Case 1: tiny (batch=16, classes=32), logits path, fold=4 -> (4, 128),
    # single full-array block (grid (1, 1)).
    yp_a = jax.random.normal(keys[0], (16, 32), dtype=jnp.float32)
    yt_a = (jax.random.uniform(keys[1], (16, 32)) > 0.5).astype(jnp.float32)
    loss_a = jax.block_until_ready(f1_loss(yp_a, yt_a))
    ref_a = f1_loss_ref(yp_a, yt_a)
    assert jnp.allclose(loss_a, ref_a, atol=2e-5, rtol=2e-5), (loss_a, ref_a)

    # Case 2: batch=1024, classes=32 (fold=4 -> lane-dense 128), bf16 preds;
    # small max_tile_rows forces multi-step accumulation on both grid cores.
    yp_b = jax.random.normal(keys[2], (1024, 32)).astype(jnp.bfloat16)
    yt_b = (jax.random.uniform(keys[3], (1024, 32)) > 0.5).astype(jnp.float32)
    loss_b = jax.block_until_ready(f1_loss(yp_b, yt_b, max_tile_rows=64))
    ref_b = f1_loss_ref(yp_b.astype(jnp.float32), yt_b)
    assert jnp.allclose(loss_b, ref_b, atol=5e-3, rtol=5e-3), (loss_b, ref_b)

    # Case 3: classes=100 (no lane folding, last dim = full array dim),
    # probabilities directly (logits=False), even 2-way split, no masking.
    yp_c = jax.random.uniform(keys[4], (256, 100), dtype=jnp.float32)
    yt_c = (jax.random.uniform(keys[5], (256, 100)) > 0.5).astype(jnp.float32)
    loss_c = jax.block_until_ready(f1_loss(yp_c, yt_c, logits=False))
    ref_c = f1_loss_ref(yp_c, yt_c, logits=False)
    assert jnp.allclose(loss_c, ref_c, atol=2e-5, rtol=2e-5), (loss_c, ref_c)

    # Case 4: ragged batch (300 rows, classes=100) with a forced small tile ->
    # exercises the cdiv grid, the partial-tile row mask and the clamped dummy
    # trailing tile.
    yp_d = jax.random.normal(keys[6], (300, 100), dtype=jnp.float32)
    yt_d = (jax.random.uniform(keys[7], (300, 100)) > 0.5).astype(jnp.float32)
    loss_d = jax.block_until_ready(f1_loss(yp_d, yt_d, max_tile_rows=128))
    ref_d = f1_loss_ref(yp_d, yt_d)
    assert jnp.allclose(loss_d, ref_d, atol=2e-5, rtol=2e-5), (loss_d, ref_d)

    print("KERNEL_OK")
</pallas_src>

<mosaic_0001>
module attributes {stable_mosaic.version = 11 : i64} {
  func.func @_f1_partials_kernel(%arg0: i32, %arg1: i32, %arg2: memref<4x128xf32, #tpu.memory_space<vmem>>, %arg3: memref<4x128xf32, #tpu.memory_space<vmem>>, %arg4: memref<1x3x4x128xf32, #tpu.memory_space<vmem>>) attributes {dimension_semantics = [#tpu.dimension_semantics<parallel>, #tpu.dimension_semantics<arbitrary>], iteration_bounds = array<i64: 1, 1>, scalar_prefetch = 0 : i64, scratch_operands = 0 : i64, tpu.core_type = #tpu.core_type<tc>, window_params = [{transform_indices = @transform_0, window_bounds = array<i64: 4, 128>}, {transform_indices = @transform_1, window_bounds = array<i64: 4, 128>}, {transform_indices = @transform_2, window_bounds = array<i64: 1, 3, 4, 128>}]} {
    %c0_i32 = arith.constant 0 : i32
    %0 = arith.cmpi eq, %arg1, %c0_i32 : i32
    %1 = arith.extui %0 : i1 to i32
    %c0_i32_0 = arith.constant 0 : i32
    %2 = arith.cmpi ne, %1, %c0_i32_0 : i32
    scf.if %2 {
      %cst_29 = arith.constant 0.000000e+00 : f32
      %35 = vector.broadcast %cst_29 : f32 to vector<1x3x4x128xf32>
      %c0_30 = arith.constant 0 : index
      %c0_31 = arith.constant 0 : index
      %c0_32 = arith.constant 0 : index
      %c0_33 = arith.constant 0 : index
      %36 = vector.load %arg4[%c0_30, %c0_31, %c0_32, %c0_33] : memref<1x3x4x128xf32, #tpu.memory_space<vmem>>, vector<1x3x4x128xf32>
      tpu.vector_store %arg4[%c0_30, %c0_31, %c0_32, %c0_33], %35 {strides = array<i32>} : memref<1x3x4x128xf32, #tpu.memory_space<vmem>>, vector<1x3x4x128xf32>,
    } else {
    }
    %cst = arith.constant 0.000000e+00 : f32
    %3 = vector.broadcast %cst : f32 to vector<4x128xf32>
    %c0 = arith.constant 0 : index
    %c0_1 = arith.constant 0 : index
    %4 = vector.load %arg2[%c0, %c0_1] : memref<4x128xf32, #tpu.memory_space<vmem>>, vector<4x128xf32>
    %c0_2 = arith.constant 0 : index
    %c0_3 = arith.constant 0 : index
    %5 = vector.load %arg3[%c0_2, %c0_3] : memref<4x128xf32, #tpu.memory_space<vmem>>, vector<4x128xf32>
    %cst_4 = arith.constant 5.000000e-01 : f32
    %6 = vector.broadcast %cst_4 : f32 to vector<4x128xf32>
    %7 = arith.mulf %6, %4 : vector<4x128xf32>
    %8 = math.tanh %7 : vector<4x128xf32>
    %cst_5 = arith.constant 1.000000e+00 : f32
    %9 = vector.broadcast %cst_5 : f32 to vector<4x128xf32>
    %10 = arith.addf %8, %9 : vector<4x128xf32>
    %cst_6 = arith.constant 5.000000e-01 : f32
    %11 = vector.broadcast %cst_6 : f32 to vector<4x128xf32>
    %12 = arith.mulf %11, %10 : vector<4x128xf32>
    %13 = arith.mulf %5, %12 : vector<4x128xf32>
    %14 = arith.addf %3, %13 : vector<4x128xf32>
    %15 = arith.addf %3, %12 : vector<4x128xf32>
    %16 = arith.addf %3, %5 : vector<4x128xf32>
    %c0_7 = arith.constant 0 : index
    %c0_8 = arith.constant 0 : index
    %c0_9 = arith.constant 0 : index
    %c0_10 = arith.constant 0 : index
    %17 = vector.load %arg4[%c0_7, %c0_8, %c0_9, %c0_10] : memref<1x3x4x128xf32, #tpu.memory_space<vmem>>, vector<1x1x4x128xf32>
    %18 = vector.shape_cast %17 : vector<1x1x4x128xf32> to vector<4x128xf32>
    %19 = arith.addf %18, %14 : vector<4x128xf32>
    %c0_11 = arith.constant 0 : index
    %c0_12 = arith.constant 0 : index
    %c0_13 = arith.constant 0 : index
    %c0_14 = arith.constant 0 : index
    %20 = vector.load %arg4[%c0_11, %c0_12, %c0_13, %c0_14] : memref<1x3x4x128xf32, #tpu.memory_space<vmem>>, vector<1x1x4x128xf32>
    %21 = vector.shape_cast %20 : vector<1x1x4x128xf32> to vector<4x128xf32>
    %22 = vector.shape_cast %19 : vector<4x128xf32> to vector<1x1x4x128xf32>
    tpu.vector_store %arg4[%c0_11, %c0_12, %c0_13, %c0_14], %22 {strides = array<i32>} : memref<1x3x4x128xf32, #tpu.memory_space<vmem>>, vector<1x1x4x128xf32>,
    %c0_15 = arith.constant 0 : index
    %c1 = arith.constant 1 : index
    %c0_16 = arith.constant 0 : index
    %c0_17 = arith.constant 0 : index
    %23 = vector.load %arg4[%c0_15, %c1, %c0_16, %c0_17] : memref<1x3x4x128xf32, #tpu.memory_space<vmem>>, vector<1x1x4x128xf32>
    %24 = vector.shape_cast %23 : vector<1x1x4x128xf32> to vector<4x128xf32>
    %25 = arith.addf %24, %15 : vector<4x128xf32>
    %c0_18 = arith.constant 0 : index
    %c1_19 = arith.constant 1 : index
    %c0_20 = arith.constant 0 : index
    %c0_21 = arith.constant 0 : index
    %26 = vector.load %arg4[%c0_18, %c1_19, %c0_20, %c0_21] : memref<1x3x4x128xf32, #tpu.memory_space<vmem>>, vector<1x1x4x128xf32>
    %27 = vector.shape_cast %26 : vector<1x1x4x128xf32> to vector<4x128xf32>
    %28 = vector.shape_cast %25 : vector<4x128xf32> to vector<1x1x4x128xf32>
    tpu.vector_store %arg4[%c0_18, %c1_19, %c0_20, %c0_21], %28 {strides = array<i32>} : memref<1x3x4x128xf32, #tpu.memory_space<vmem>>, vector<1x1x4x128xf32>,
    %c0_22 = arith.constant 0 : index
    %c2 = arith.constant 2 : index
    %c0_23 = arith.constant 0 : index
    %c0_24 = arith.constant 0 : index
    %29 = vector.load %arg4[%c0_22, %c2, %c0_23, %c0_24] : memref<1x3x4x128xf32, #tpu.memory_space<vmem>>, vector<1x1x4x128xf32>
    %30 = vector.shape_cast %29 : vector<1x1x4x128xf32> to vector<4x128xf32>
    %31 = arith.addf %30, %16 : vector<4x128xf32>
    %c0_25 = arith.constant 0 : index
    %c2_26 = arith.constant 2 : index
    %c0_27 = arith.constant 0 : index
    %c0_28 = arith.constant 0 : index
    %32 = vector.load %arg4[%c0_25, %c2_26, %c0_27, %c0_28] : memref<1x3x4x128xf32, #tpu.memory_space<vmem>>, vector<1x1x4x128xf32>
    %33 = vector.shape_cast %32 : vector<1x1x4x128xf32> to vector<4x128xf32>
    %34 = vector.shape_cast %31 : vector<4x128xf32> to vector<1x1x4x128xf32>
    tpu.vector_store %arg4[%c0_25, %c2_26, %c0_27, %c0_28], %34 {strides = array<i32>} : memref<1x3x4x128xf32, #tpu.memory_space<vmem>>, vector<1x1x4x128xf32>,
    return
  }
  func.func @transform_0(%arg0: i32, %arg1: i32) -> (i32, i32) {
    %c1_i32 = arith.constant 1 : i32
    %0 = arith.muli %arg0, %c1_i32 : i32
    %1 = arith.addi %0, %arg1 : i32
    %c0_i32 = arith.constant 0 : i32
    %c0_i32_0 = arith.constant 0 : i32
    return %1, %c0_i32 : i32, i32
  }
  func.func @transform_1(%arg0: i32, %arg1: i32) -> (i32, i32) {
    %c1_i32 = arith.constant 1 : i32
    %0 = arith.muli %arg0, %c1_i32 : i32
    %1 = arith.addi %0, %arg1 : i32
    %c0_i32 = arith.constant 0 : i32
    %c0_i32_0 = arith.constant 0 : i32
    return %1, %c0_i32 : i32, i32
  }
  func.func @transform_2(%arg0: i32, %arg1: i32) -> (i32, i32, i32, i32) {
    %c0_i32 = arith.constant 0 : i32
    %c0_i32_0 = arith.constant 0 : i32
    %c0_i32_1 = arith.constant 0 : i32
    %c0_i32_2 = arith.constant 0 : i32
    return %arg0, %c0_i32, %c0_i32_0, %c0_i32_1 : i32, i32, i32, i32
  }
}

</mosaic_0001>

<llo_original>
// kernel: tpu_custom_call.1
$region0: #{tpu_custom_call.1}
  #allocation0 [shape = 'u32[]', space=smem, size = 0x4, offset = 0x4, fixed_abs, tag = 'smem constant byte address 0x4 - core index']
  #allocation1 [shape = 'u32[144,128]{1,0:T(1,128)}', space=vmem, size = 0x12000, scoped, tag = 'internal scratch']
  %s0 = inlined_call_operand.hbm [shape: f32[4,128], index: 0, kind: input, shape index: {}]
  %s1 = inlined_call_operand.hbm [shape: f32[4,128], index: 1, kind: input, shape index: {}]
  %s2 = inlined_call_operand.hbm [shape: f32[1,3,4,128], index: 2, kind: output, shape index: {}]
  %s3 = sld [smem:[#allocation0]]
  $region30: #{tpu_custom_call.1} parent=0
    _
  %s5 = ssub.s32 1, %s3
  %s6 = scalar_select 0, %s5, %s3
  $region1: #{tpu_custom_call.1} parent=0
    #allocation2 [shape = 'u8[2048]{0}', space=vmem, size = 0x800, scoped, tag = 'input window, operand 0, single buffered']
    #allocation3 [shape = 's32[1]{0}', space=sflag, size = 0x4, scoped, tag = 'scoped memory for tpu_custom_call.1']
    #allocation4 [shape = 's32[1]{0}', space=sflag, size = 0x4, scoped, tag = 'scoped memory for tpu_custom_call.1']
    #allocation5 [shape = 'u8[2048]{0}', space=vmem, size = 0x800, scoped, tag = 'input window, operand 1, single buffered']
    #allocation6 [shape = 's32[1]{0}', space=sflag, size = 0x4, scoped, tag = 'scoped memory for tpu_custom_call.1']
    #allocation7 [shape = 'u8[6144]{0}', space=vmem, size = 0x1800, scoped, tag = 'output window, operand 0, single buffered']
    %7 = vsyncpa [#allocation3], 0
    %8 = vsyncpa [#allocation6], 0
    %9 = vsyncpa [#allocation4], 0
    // Predicated region
    $region2: #{tpu_custom_call.1} parent=1 // pred_check
      _
    $region3: #{tpu_custom_call.1} parent=1 // pred_check_branch
      %11 = sbr.rel (0) target = $region5
    $region4: #{tpu_custom_call.1} parent=1 // pred_region
      %s12 = sadd.s32 0, 0
      %s14 = ssub.s32 64, 64
      %15 = vsyncadd [#allocation3], %s14
      %s16 = smul.addr %s12, 64
      %s17 = scalar_lea.hbm %s0, %s16
      %s19 = sshll.u32 [#allocation2], 4
      %s20 = int_to_ptr.vmem [resolvable:$true] %s19
      %22 = dma.hbm_to_vmem [thread:$0]  %s17, 64, %s20, [#allocation3]
    $region5: #{tpu_custom_call.1} parent=1 // pred_fallthru
      _
    // Predicated region
    $region6: #{tpu_custom_call.1} parent=1 // pred_check
      _
    $region7: #{tpu_custom_call.1} parent=1 // pred_check_branch
      %24 = sbr.rel (0) target = $region9
    $region8: #{tpu_custom_call.1} parent=1 // pred_region
      %s25 = sadd.s32 0, 0
      %s27 = ssub.s32 64, 64
      %28 = vsyncadd [#allocation6], %s27
      %s29 = smul.addr %s25, 64
      %s30 = scalar_lea.hbm %s1, %s29
      %s32 = sshll.u32 [#allocation5], 4
      %s33 = int_to_ptr.vmem [resolvable:$true] %s32
      %35 = dma.hbm_to_vmem [thread:$0]  %s30, 64, %s33, [#allocation6]
    $region9: #{tpu_custom_call.1} parent=1 // pred_fallthru
      _
    // Predicated region
    $region10: #{tpu_custom_call.1} parent=1 // pred_check
      _
    $region11: #{tpu_custom_call.1} parent=1 // pred_check_branch
      %37 = sbr.rel (0) target = $region13
    $region12: #{tpu_custom_call.1} parent=1 // pred_region
      %38 = dma.done [#allocation3], 64
    $region13: #{tpu_custom_call.1} parent=1 // pred_fallthru
      _
    // Predicated region
    $region14: #{tpu_custom_call.1} parent=1 // pred_check
      _
    $region15: #{tpu_custom_call.1} parent=1 // pred_check_branch
      %40 = sbr.rel (0) target = $region17
    $region16: #{tpu_custom_call.1} parent=1 // pred_region
      %41 = dma.done [#allocation6], 64
    $region17: #{tpu_custom_call.1} parent=1 // pred_fallthru
      _
    %s42 = sadd.s32 0, 0
    %s43 = sadd.s32 0, 0
    %p44 = scmp.eq.s32.totalorder 0, 0
    // Predicated region
    $region18: #{tpu_custom_call.1} parent=1 // pred_check
      %p45 = pneg %p44
    $region19: #{tpu_custom_call.1} parent=1 // pred_check_branch
      %47 = sbr.rel (%p45) target = $region21
    $region20: #{tpu_custom_call.1} parent=1 // pred_region
      %48 = vst [vmem:[#allocation7] sm:$0xf] 0.0
      %49 = vst [vmem:[#allocation7 + $0x4] sm:$0xf] 0.0
      %50 = vst [vmem:[#allocation7 + $0x8] sm:$0xf] 0.0
    $region21: #{tpu_custom_call.1} parent=1 // pred_fallthru
      _
    %v51 = vld [vmem:[#allocation2] sm:$0xf]
    %v52 = vld [vmem:[#allocation5] sm:$0xf]
    %v53 = vmul.f32 %v51, 0.5
    %v54 = vtanh.pop %v53
    %v55 = vadd.f32 %v54, 1.0
    %v56 = vmul.f32 %v55, 0.5
    %v57 = vmul.f32 %v52, %v56
    %v58 = vadd.f32 %v57, 0.0
    %v59 = vadd.f32 %v56, 0.0
    %v60 = vadd.f32 %v52, 0.0
    %v61 = vld [vmem:[#allocation7] sm:$0xf]
    %v62 = vadd.f32 %v61, %v58
    %63 = vst [vmem:[#allocation7] sm:$0xf] %v62
    %s64 = scalar_lea.vmem [#allocation7], 4
    %v65 = vld [vmem:[%s64] sm:$0xf]
    %v66 = vadd.f32 %v65, %v59
    %67 = vst [vmem:[%s64] sm:$0xf] %v66
    %s68 = scalar_lea.vmem [#allocation7], 8
    %v69 = vld [vmem:[%s68] sm:$0xf]
    %v70 = vadd.f32 %v69, %v60
    %71 = vst [vmem:[%s68] sm:$0xf] %v70
    // Predicated region
    $region22: #{tpu_custom_call.1} parent=1 // pred_check
      _
    $region23: #{tpu_custom_call.1} parent=1 // pred_check_branch
      %73 = sbr.rel (0) target = $region25
    $region24: #{tpu_custom_call.1} parent=1 // pred_region
      %s75 = ssub.s32 192, 192
      %76 = vsyncadd [#allocation4], %s75
      %s77 = sshll.u32 [#allocation7], 4
      %s78 = int_to_ptr.vmem [resolvable:$true] %s77
      %83 = dma.vmem_to_hbm [thread:$0]  %s78, 192, %s2, [#allocation4], 64, 64, 4
    $region25: #{tpu_custom_call.1} parent=1 // pred_fallthru
      _
    // Predicated region
    $region26: #{tpu_custom_call.1} parent=1 // pred_check
      _
    $region27: #{tpu_custom_call.1} parent=1 // pred_check_branch
      %85 = sbr.rel (0) target = $region29
    $region28: #{tpu_custom_call.1} parent=1 // pred_region
      %86 = dma.done [#allocation4], 192
    $region29: #{tpu_custom_call.1} parent=1 // pred_fallthru
      _
    %87 = vsyncpa [#allocation3], 1
    %88 = vsyncpa [#allocation6], 1
    %89 = vsyncpa [#allocation4], 1

</llo_original>
